<compile_context>
chip_gen: v6e
topology: v6e:2x2x1
jax: 0.10.0
libtpu: 0.0.40
codegen_flags: <defaults>
</compile_context>

<pallas_src>
import functools

import jax
import jax.numpy as jnp
from jax.experimental import pallas as pl
from jax.experimental.pallas import tpu as pltpu


# ---------------------------------------------------------------------------
# Pallas kernel: fixed-feedback projection  (B, K) @ (K, F) -> (B, F)
# ---------------------------------------------------------------------------
def _feedback_kernel(e_ref, w_ref, o_ref):
    # f32 accumulate on the MXU; downcast to the activation dtype is fused
    # into the store so there is no extra HBM round trip.
    o_ref[...] = jnp.dot(
        e_ref[...].astype(jnp.float32),
        w_ref[...].astype(jnp.float32),
        preferred_element_type=jnp.float32,
    ).astype(o_ref.dtype)


def _round_up(x, m):
    return ((x + m - 1) // m) * m


def _choose_tiles(B, F, *, max_tile_b=256, max_tile_f=4096, min_blocks=2):
    """Balanced, 128-lane-aligned tiles; guarantees >=min_blocks grid blocks
    (v7x has 2 TensorCores) whenever the problem is large enough to split."""
    # --- batch tile ---
    if B <= max_tile_b:
        tb = B                                  # full batch, one tile
    else:
        nb = pl.cdiv(B, max_tile_b)
        tb = _round_up(pl.cdiv(B, nb), 8)       # balanced, sublane aligned
    b_tiles = pl.cdiv(B, tb)

    # --- feature tile (lane-dense) ---
    if F <= 128:
        tf = F                                  # full (tiny) feature dim
    else:
        nf = pl.cdiv(F, max_tile_f)
        if b_tiles * nf < min_blocks:           # keep both v7x TCs busy
            nf = max(nf, pl.cdiv(min_blocks, b_tiles))
        tf = _round_up(pl.cdiv(F, nf), 128)     # balanced, 128 aligned
    return tb, tf


def feedback_matmul(e, w_flat, out_dtype, *, max_tile_b=256, max_tile_f=4096):
    """DFA/DRTP gradient estimate: e (B, K) @ w_flat (K, F) -> (B, F).

    Roofline: for realistic B the binding HBM stream is the (B, F) output
    write, so the output is written exactly once (no pad + slice), tiles are
    large and lane-dense, and the grid is split so every TensorCore streams
    its own output/weight slab.
    """
    B, K = e.shape
    K2, F = w_flat.shape
    if K != K2:
        raise ValueError(f"contraction mismatch: e K={K}, w K={K2}")

    tb, tf = _choose_tiles(B, F, max_tile_b=max_tile_b, max_tile_f=max_tile_f)
    grid = (pl.cdiv(B, tb), pl.cdiv(F, tf))

    # Explicit VMEM budget: double-buffered e / w / out tiles plus headroom.
    out_bytes = jnp.dtype(out_dtype).itemsize
    buf_bytes = 2 * (
        tb * K * e.dtype.itemsize
        + K * tf * w_flat.dtype.itemsize
        + tb * tf * out_bytes
    )
    vmem_limit = int(min(max(3 * buf_bytes + (8 << 20), 32 << 20), 56 << 20))

    return pl.pallas_call(
        _feedback_kernel,
        out_shape=jax.ShapeDtypeStruct((B, F), out_dtype),
        grid=grid,                                        # F innermost: e tile reused
        in_specs=[
            pl.BlockSpec((tb, K), lambda i, j: (i, 0)),   # error vector (f32)
            pl.BlockSpec((K, tf), lambda i, j: (0, j)),   # bf16 weight slab
        ],
        out_specs=pl.BlockSpec((tb, tf), lambda i, j: (i, j)),
        compiler_params=pltpu.CompilerParams(
            dimension_semantics=("parallel", "parallel"),
            vmem_limit_bytes=vmem_limit,
        ),
    )(e, w_flat)


# ---------------------------------------------------------------------------
# TrainingHook forward (identity) + DRTP/DFA/sDFA/shallow gradient substitution
# ---------------------------------------------------------------------------
_SUPPORTED_MODES = ("BP", "FA", "DFA", "DRTP", "sDFA", "shallow")


def prepare_feedback_weights(fb_weights, dtype=jnp.bfloat16):
    """Hoisted constant prep: flatten to (num_classes, C*H*W) and cast to bf16
    ONCE (fixed_fb_weights never change during training)."""
    w = jnp.asarray(fb_weights)
    return w.reshape(w.shape[0], -1).astype(dtype)


def training_hook(inp, labels, y, fb_weights, train_mode, grad_dtype=None):
    """Forward = identity on `inp`; backward replaces the gradient per mode.

    `fb_weights` may be the raw (K, C, H, W) tensor or the pre-flattened
    (K, F) bf16 tensor from prepare_feedback_weights (preferred: keeps the
    per-step backward graph to exactly one pallas_call).
    """
    assert train_mode in _SUPPORTED_MODES, (
        "=== ERROR: Unsupported hook training mode " + str(train_mode) + "."
    )
    if train_mode in ("BP", "FA"):   # the module remaps FA -> BP at call time
        return inp                   # plain identity, gradients flow through

    # labels / y / fixed feedback weights are never differentiated (the module
    # sets fixed_fb_weights.requires_grad = False); stop_gradient + closure
    # means no full-size zero cotangents are materialized every step.
    labels = jax.lax.stop_gradient(labels)
    y = jax.lax.stop_gradient(y)
    if fb_weights is None:
        w_flat = None
    else:
        fbw = jax.lax.stop_gradient(jnp.asarray(fb_weights))
        w_flat = fbw.reshape(fbw.shape[0], -1)   # free if already prepared

    @jax.custom_vjp
    def _hook(x):
        return x

    def _fwd(x):
        return x, None                           # no residuals needed

    def _bwd(_, g):
        if train_mode == "shallow":
            return (jnp.zeros(g.shape, g.dtype),)
        if train_mode == "DFA":
            e = y - labels
        elif train_mode == "sDFA":
            e = jnp.sign(y)
        else:                                    # DRTP
            e = labels
        e = e.astype(jnp.float32)                # keep error vector full precision
        out_dtype = g.dtype if grad_dtype is None else grad_dtype
        grad_est = feedback_matmul(e, w_flat, out_dtype=out_dtype)
        return (grad_est.reshape(g.shape).astype(g.dtype),)

    _hook.defvjp(_fwd, _bwd)
    return _hook(inp)


# ---------------------------------------------------------------------------
# Parameter init: the module's default 'masked' branch ultimately just sets
# fixed_fb_weights = 2 * rand(dim_hook) - 1  (the mask `b` it builds is unused)
# ---------------------------------------------------------------------------
def init_fixed_fb_weights(key, dim_hook, dtype=jnp.bfloat16):
    # Stored bf16-resident so the backward kernel streams half the HBM bytes
    # for the weight slab; DFA/DRTP feedback weights are random noise.
    # TODO(synk): only the default 'masked' (== uniform[-1,1]) init branch is
    # implemented; the other torch/np RNG variants have no JAX equivalent here.
    w = 2.0 * jax.random.uniform(key, dim_hook, dtype=jnp.float32) - 1.0
    return w.astype(dtype)


if __name__ == "__main__":
    key = jax.random.PRNGKey(0)
    k_x, k_y, k_w, k_lbl = jax.random.split(key, 4)

    batch, channels, height, width = 2, 4, 16, 16
    num_classes = 10
    dim_hook = (num_classes, channels, height, width)

    # NCHW activations, (K, C, H, W) fixed feedback weights.
    x = jax.random.normal(k_x, (batch, channels, height, width), jnp.float32)
    labels = jax.nn.one_hot(
        jax.random.randint(k_lbl, (batch,), 0, num_classes), num_classes
    ).astype(jnp.float32)
    y = jax.nn.softmax(jax.random.normal(k_y, (batch, num_classes)), axis=-1)
    fb_weights = init_fixed_fb_weights(k_w, dim_hook)
    w_flat = prepare_feedback_weights(fb_weights)       # hoisted constant prep
    w_flat_f32 = w_flat.astype(jnp.float32)

    # Forward: identity pass-through.
    out = jax.block_until_ready(training_hook(x, labels, y, w_flat, "DRTP"))
    assert out.shape == x.shape and out.dtype == x.dtype
    assert bool(jnp.array_equal(out, x))

    # Backward (DRTP): grad wrt input is replaced by labels @ B_flat.
    grad_drtp = jax.block_until_ready(
        jax.grad(lambda xx: training_hook(xx, labels, y, w_flat, "DRTP").sum())(x)
    )
    assert grad_drtp.shape == x.shape and grad_drtp.dtype == x.dtype
    ref_drtp = (labels @ w_flat_f32).reshape(x.shape)
    assert bool(jnp.allclose(grad_drtp, ref_drtp, atol=1e-3, rtol=1e-3))

    # Backward (DFA): grad replaced by (y - labels) @ B_flat, e kept in f32.
    grad_dfa = jax.block_until_ready(
        jax.grad(lambda xx: training_hook(xx, labels, y, w_flat, "DFA").sum())(x)
    )
    ref_dfa = ((y - labels) @ w_flat_f32).reshape(x.shape)
    assert bool(jnp.allclose(grad_dfa, ref_dfa, atol=2e-3, rtol=2e-3))

    # Backward (sDFA): grad replaced by sign(y) @ B_flat.
    grad_sdfa = jax.block_until_ready(
        jax.grad(lambda xx: training_hook(xx, labels, y, w_flat, "sDFA").sum())(x)
    )
    ref_sdfa = (jnp.sign(y) @ w_flat_f32).reshape(x.shape)
    assert bool(jnp.allclose(grad_sdfa, ref_sdfa, atol=2e-3, rtol=2e-3))

    # Backward (BP / FA): gradient passes through unchanged.
    grad_bp = jax.block_until_ready(
        jax.grad(lambda xx: training_hook(xx, labels, y, None, "BP").sum())(x)
    )
    assert bool(jnp.allclose(grad_bp, jnp.ones_like(x)))

    # Backward (shallow): gradient is zeroed.
    grad_sh = jax.block_until_ready(
        jax.grad(lambda xx: training_hook(xx, labels, y, None, "shallow").sum())(x)
    )
    assert bool(jnp.allclose(grad_sh, jnp.zeros_like(x)))

    print("KERNEL_OK")
</pallas_src>

<mosaic_0001>
module attributes {stable_mosaic.version = 11 : i64} {
  func.func @_feedback_kernel(%arg0: i32, %arg1: i32, %arg2: memref<2x10xf32, #tpu.memory_space<vmem>>, %arg3: memref<10x512xbf16, #tpu.memory_space<vmem>>, %arg4: memref<2x512xf32, #tpu.memory_space<vmem>>) attributes {dimension_semantics = [#tpu.dimension_semantics<parallel>, #tpu.dimension_semantics<parallel>], iteration_bounds = array<i64: 1, 2>, scalar_prefetch = 0 : i64, scratch_operands = 0 : i64, tpu.core_type = #tpu.core_type<tc>, window_params = [{transform_indices = @transform_0, window_bounds = array<i64: 2, 10>}, {transform_indices = @transform_1, window_bounds = array<i64: 10, 512>}, {transform_indices = @transform_2, window_bounds = array<i64: 2, 512>}]} {
    %c0 = arith.constant 0 : index
    %c0_0 = arith.constant 0 : index
    %0 = vector.load %arg2[%c0, %c0_0] : memref<2x10xf32, #tpu.memory_space<vmem>>, vector<2x10xf32>
    %c0_1 = arith.constant 0 : index
    %c0_2 = arith.constant 0 : index
    %1 = vector.load %arg3[%c0_1, %c0_2] : memref<10x512xbf16, #tpu.memory_space<vmem>>, vector<10x512xbf16>
    %2 = arith.extf %1 : vector<10x512xbf16> to vector<10x512xf32>
    %cst = arith.constant dense<0.000000e+00> : vector<2x512xf32>
    %3 = tpu.matmul %0, %2, %cst {dimension_numbers = #tpu.dot_dimension_numbers<[1], [0], [0], [1], [0, 0, 1, 1], [], []>} : vector<2x10xf32>, vector<10x512xf32>, vector<2x512xf32> -> vector<2x512xf32>
    %c0_3 = arith.constant 0 : index
    %c0_4 = arith.constant 0 : index
    %4 = vector.load %arg4[%c0_3, %c0_4] : memref<2x512xf32, #tpu.memory_space<vmem>>, vector<2x512xf32>
    tpu.vector_store %arg4[%c0_3, %c0_4], %3 {strides = array<i32>} : memref<2x512xf32, #tpu.memory_space<vmem>>, vector<2x512xf32>,
    return
  }
  func.func @transform_0(%arg0: i32, %arg1: i32) -> (i32, i32) {
    %c0_i32 = arith.constant 0 : i32
    %c0_i32_0 = arith.constant 0 : i32
    return %arg0, %c0_i32 : i32, i32
  }
  func.func @transform_1(%arg0: i32, %arg1: i32) -> (i32, i32) {
    %c0_i32 = arith.constant 0 : i32
    %c0_i32_0 = arith.constant 0 : i32
    return %c0_i32, %arg1 : i32, i32
  }
  func.func @transform_2(%arg0: i32, %arg1: i32) -> (i32, i32) {
    %c0_i32 = arith.constant 0 : i32
    return %arg0, %arg1 : i32, i32
  }
}

</mosaic_0001>

<llo_original>
// kernel: tpu_custom_call.1
$region0: #{tpu_custom_call.1}
  #allocation0 [shape = 'u32[]', space=smem, size = 0x4, offset = 0x4, fixed_abs, tag = 'smem constant byte address 0x4 - core index']
  #allocation1 [shape = 'u32[144,128]{1,0:T(1,128)}', space=vmem, size = 0x12000, scoped, tag = 'internal scratch']
  %s0 = inlined_call_operand.hbm [shape: f32[2,10], index: 0, kind: input, shape index: {}]
  %s1 = inlined_call_operand.hbm [shape: bf16[10,1024], index: 1, kind: input, shape index: {}]
  %s2 = inlined_call_operand.hbm [shape: f32[2,1024], index: 2, kind: output, shape index: {}]
  %s3 = sld [smem:[#allocation0]]
  $region49: #{tpu_custom_call.1} parent=0
    _
  %s5 = ssub.s32 1, %s3
  %s6 = scalar_select 0, %s5, %s3
  $region1: #{tpu_custom_call.1} parent=0
    #allocation2 [shape = 'u8[1024]{0}', space=vmem, size = 0x400, scoped, tag = 'input window, operand 0, single buffered']
    #allocation3 [shape = 's32[2]{0}', space=sflag, size = 0x8, scoped, tag = 'scoped memory for tpu_custom_call.1']
    #allocation4 [shape = 's32[2]{0}', space=sflag, size = 0x8, scoped, tag = 'scoped memory for tpu_custom_call.1']
    #allocation5 [shape = 'u8[32768]{0}', space=vmem, size = 0x8000, scoped, tag = 'input window, operand 1']
    #allocation6 [shape = 's32[2]{0}', space=sflag, size = 0x8, scoped, tag = 'scoped memory for tpu_custom_call.1']
    #allocation7 [shape = 'u8[8192]{0}', space=vmem, size = 0x2000, scoped, tag = 'output window, operand 0']
    %7 = vsyncpa [#allocation3], 0
    %8 = vsyncpa [#allocation6], 0
    %s9 = scalar_lea.sflag [#allocation6], 1
    %10 = vsyncpa %s9, 0
    %11 = vsyncpa [#allocation4], 0
    %s12 = scalar_lea.sflag [#allocation4], 1
    %13 = vsyncpa %s12, 0
    loop: start=0, step=1, limit=4
    $region2: #{tpu_custom_call.1} parent=1 // loop_pre_header
      _
    $region3: #{tpu_custom_call.1} parent=1 // loop_header
      %s15 = sphi 0, %s19
      %p16 = scmp.ge.s32.totalorder %s15, 4
      %s22 = sphi 0, %s34
      %s23 = sphi 0, %s30
      %s24 = sphi 0, %s22
      %s25 = sphi 0, %s23
      %s26 = sphi 0, %s24
      %s27 = sphi 0, %s25
      %s37 = sphi 0, %s39
      %s40 = sphi 0, %s37
      %s41 = sphi 0, %s40
      %s57 = sphi 0, %s41
      %s63 = sphi 0, %s65
      %s66 = sphi 0, %s63
      %s67 = sphi 0, %s66
      %s83 = sphi 0, %s67
      %s91 = sphi 0, %s93
      %s94 = sphi 0, %s91
      %s95 = sphi 0, %s94
      %s111 = sphi 0, %s95
    $region4: #{tpu_custom_call.1} parent=1 // loop_header_branch
      %18 = sbr.rel (%p16) target = $region8
    $region5: #{tpu_custom_call.1} parent=1 // loop_body
      %s20 = ssub.s32 %s15, 1
      %s21 = ssub.s32 %s15, 2
      %s28 = sadd.s32 1, %s23
      %p29 = scmp.ge.s32.totalorder %s28, 2
      %s30 = scalar_select %p29, 0, %s28
      %s31 = sadd.s32 1, %s22
      %s32 = scalar_select %p29, %s31, %s22
      %p33 = scmp.ge.s32.totalorder %s32, 1
      %s34 = scalar_select %p33, 0, %s32
      %s35 = ssub.s32 %s22, %s34
      %p36 = scmp.eq.s32.totalorder %s35, 0
      %s38 = sadd.s32 %s37, 1
      %s39 = scalar_select %p36, %s37, %s38
      %p42 = pneg %p36
      %p43 = scmp.eq.s32.totalorder %s15, 1
      %p44 = por %p42, %p43
      %p45 = scmp.ne.s32.totalorder %s37, %s40
      %p46 = scmp.eq.s32.totalorder %s15, 0
      %p47 = por %p45, %p46
      %p48 = scmp.ne.s32.totalorder %s37, %s40
      %p49 = scmp.eq.s32.totalorder %s20, 1
      %p50 = por %p48, %p49
      %p51 = scmp.ne.s32.totalorder %s40, %s41
      %p52 = scmp.eq.s32.totalorder %s20, 0
      %p53 = por %p51, %p52
      %p54 = scmp.ne.s32.totalorder %s40, %s41
      %p55 = scmp.eq.s32.totalorder %s21, 1
      %p56 = por %p54, %p55
      %p58 = scmp.ne.s32.totalorder %s41, %s57
      %p59 = scmp.eq.s32.totalorder %s21, 0
      %p60 = por %p58, %p59
      %s61 = ssub.s32 %s23, %s30
      %p62 = scmp.eq.s32.totalorder %s61, 0
      %s64 = sadd.s32 %s63, 1
      %s65 = scalar_select %p62, %s63, %s64
      %p68 = pneg %p62
      %p69 = scmp.eq.s32.totalorder %s15, 1
      %p70 = por %p68, %p69
      %p71 = scmp.ne.s32.totalorder %s63, %s66
      %p72 = scmp.eq.s32.totalorder %s15, 0
      %p73 = por %p71, %p72
      %p74 = scmp.ne.s32.totalorder %s63, %s66
      %p75 = scmp.eq.s32.totalorder %s20, 1
      %p76 = por %p74, %p75
      %p77 = scmp.ne.s32.totalorder %s66, %s67
      %p78 = scmp.eq.s32.totalorder %s20, 0
      %p79 = por %p77, %p78
      %p80 = scmp.ne.s32.totalorder %s66, %s67
      %p81 = scmp.eq.s32.totalorder %s21, 1
      %p82 = por %p80, %p81
      %p84 = scmp.ne.s32.totalorder %s67, %s83
      %p85 = scmp.eq.s32.totalorder %s21, 0
      %p86 = por %p84, %p85
      %s87 = ssub.s32 %s22, %s34
      %s88 = ssub.s32 %s23, %s30
      %s89 = sor.u32 %s87, %s88
      %p90 = scmp.eq.s32.totalorder %s89, 0
      %s92 = sadd.s32 %s91, 1
      %s93 = scalar_select %p90, %s91, %s92
      %p96 = pneg %p90
      %p97 = scmp.eq.s32.totalorder %s15, 1
      %p98 = por %p96, %p97
      %p99 = scmp.ne.s32.totalorder %s91, %s94
      %p100 = scmp.eq.s32.totalorder %s15, 0
      %p101 = por %p99, %p100
      %p102 = scmp.ne.s32.totalorder %s91, %s94
      %p103 = scmp.eq.s32.totalorder %s20, 1
      %p104 = por %p102, %p103
      %p105 = scmp.ne.s32.totalorder %s94, %s95
      %p106 = scmp.eq.s32.totalorder %s20, 0
      %p107 = por %p105, %p106
      %p108 = scmp.ne.s32.totalorder %s94, %s95
      %p109 = scmp.eq.s32.totalorder %s21, 1
      %p110 = por %p108, %p109
      %p112 = scmp.ne.s32.totalorder %s95, %s111
      %p113 = scmp.eq.s32.totalorder %s21, 0
      %p114 = por %p112, %p113
      %p115 = scmp.le.s32.totalorder 1, %s15
      %p116 = scmp.lt.s32.totalorder %s15, 3
      %p117 = pnand %p115, %p116
      %p118 = pneg %p117
      // Predicated region
      $region9: #{tpu_custom_call.1} parent=5 // pred_check
        _
      $region10: #{tpu_custom_call.1} parent=5 // pred_check_branch
        %120 = sbr.rel (%p117) target = $region12
      $region11: #{tpu_custom_call.1} parent=5 // pred_region
        %s121 = ssub.s32 %s15, 1
        // Predicated region
        $region13: #{tpu_custom_call.1} parent=11 // pred_check
          %p122 = pneg %p53
        $region14: #{tpu_custom_call.1} parent=11 // pred_check_branch
          %124 = sbr.rel (%p122) target = $region16
        $region15: #{tpu_custom_call.1} parent=11 // pred_region
          %s126 = ssub.s32 32, 32
          %127 = vsyncadd [#allocation3], %s126
          %s128 = smul.addr %s24, 32
          %s129 = scalar_lea.hbm %s0, %s128
          %s131 = sshll.u32 [#allocation2], 4
          %s132 = int_to_ptr.vmem [resolvable:$true] %s131
          %134 = dma.hbm_to_vmem [thread:$0]  %s129, 32, %s132, [#allocation3]
        $region16: #{tpu_custom_call.1} parent=11 // pred_fallthru
          _
      $region12: #{tpu_custom_call.1} parent=5 // pred_fallthru
        _
      %p135 = scmp.lt.s32.totalorder %s15, 2
      // Predicated region
      $region17: #{tpu_custom_call.1} parent=5 // pred_check
        %p136 = pneg %p135
      $region18: #{tpu_custom_call.1} parent=5 // pred_check_branch
        %138 = sbr.rel (%p136) target = $region20
      $region19: #{tpu_custom_call.1} parent=5 // pred_region
        // Predicated region
        $region21: #{tpu_custom_call.1} parent=19 // pred_check
          %p139 = pneg %p73
        $region22: #{tpu_custom_call.1} parent=19 // pred_check_branch
          %141 = sbr.rel (%p139) target = $region24
        $region23: #{tpu_custom_call.1} parent=19 // pred_region
          %s142 = sand.u32 %s63, 1
          %s143 = scalar_lea.sflag [#allocation6], %s142
          %s144 = sand.u32 %s63, 1
          %s145 = smul.addr %s144, 32
          %s146 = scalar_lea.vmem [#allocation5], %s145
          %s147 = smul.u32 4, %s23
          %s149 = ssub.s32 512, 512
          %150 = vsyncadd %s143, %s149
          %s151 = smul.addr %s147, 64
          %s152 = scalar_lea.hbm %s1, %s151
          %s153 = sshll.u32 %s146, 4
          %s154 = int_to_ptr.vmem [resolvable:$true] %s153
          %159 = dma.hbm_to_vmem [thread:$0]  %s152, 512, %s154, %s143, 512, 256, 16
        $region24: #{tpu_custom_call.1} parent=19 // pred_fallthru
          _
      $region20: #{tpu_custom_call.1} parent=5 // pred_fallthru
        _
      %p160 = scmp.le.s32.totalorder 1, %s15
      %p161 = scmp.lt.s32.totalorder %s15, 3
      %p162 = pnand %p160, %p161
      %p163 = pneg %p162
      // Predicated region
      $region25: #{tpu_custom_call.1} parent=5 // pred_check
        _
      $region26: #{tpu_custom_call.1} parent=5 // pred_check_branch
        %165 = sbr.rel (%p162) target = $region28
      $region27: #{tpu_custom_call.1} parent=5 // pred_region
        %s166 = ssub.s32 %s15, 1
        // Predicated region
        $region29: #{tpu_custom_call.1} parent=27 // pred_check
          %p167 = pneg %p53
        $region30: #{tpu_custom_call.1} parent=27 // pred_check_branch
          %169 = sbr.rel (%p167) target = $region32
        $region31: #{tpu_custom_call.1} parent=27 // pred_region
          %170 = dma.done [#allocation3], 32
        $region32: #{tpu_custom_call.1} parent=27 // pred_fallthru
          _
        %s171 = sand.u32 %s66, 1
        %s172 = scalar_lea.sflag [#allocation6], %s171
        %s173 = sand.u32 %s66, 1
        %s174 = smul.addr %s173, 32
        %s175 = scalar_lea.vmem [#allocation5], %s174
        // Predicated region
        $region33: #{tpu_custom_call.1} parent=27 // pred_check
          %p176 = pneg %p79
        $region34: #{tpu_custom_call.1} parent=27 // pred_check_branch
          %178 = sbr.rel (%p176) target = $region36
        $region35: #{tpu_custom_call.1} parent=27 // pred_region
          %179 = dma.done %s172, 512
        $region36: #{tpu_custom_call.1} parent=27 // pred_fallthru
          _
        %p180 = pneg %p53
        %p181 = pneg %p50
        %s182 = sand.u32 %s66, 1
        %s183 = scalar_lea.sflag [#allocation6], %s182
        %s184 = sand.u32 %s66, 1
        %s185 = smul.addr %s184, 32
        %s186 = scalar_lea.vmem [#allocation5], %s185
        %p187 = pneg %p79
        %p188 = pneg %p76
        %p189 = pneg %p107
        %p190 = pneg %p104
        %s191 = sand.u32 %s94, 1
        %s192 = scalar_lea.sflag [#allocation4], %s191
        %s193 = sand.u32 %s94, 1
        %s194 = smul.addr %s193, 8
        %s195 = scalar_lea.vmem [#allocation7], %s194
        %s196 = smul.u32 4, %s25
        %s197 = smul.u32 4, %s25
        %v198 = vld [vmem:[#allocation2] sm:$0x3]
        %v199 = vld [vmem:[%s175] sm:$0xff]
        %v200 = vld [vmem:[%s175 + $0x8] sm:$0xff]
        %v201 = vld [vmem:[%s175 + $0x10] sm:$0x11]
        %v202 = vld [vmem:[%s175 + $0x18] sm:$0x11]
        %v203 = vunpack.c.l.bf16 %v199
        %v204 = vunpack.c.h.bf16 %v199
        %v205 = vunpack.c.l.bf16 %v200
        %v206 = vunpack.c.h.bf16 %v200
        %v207 = vunpack.c.l.bf16 %v201
        %v208 = vunpack.c.h.bf16 %v201
        %v209 = vunpack.c.l.bf16 %v202
        %v210 = vunpack.c.h.bf16 %v202
        %vm211 = vcmask 80896
        %v213 = vsel %vm211, %v198, 0
        %vm215 = vcmask 1041408
        %v217 = vsel %vm215, %v207, 0
        %v220 = vsel %vm215, %v208, 0
        %v223 = vsel %vm215, %v209, 0
        %v226 = vsel %vm215, %v210, 0
        %228 = vmatprep.subr.mxu0 0.0
        %229 = vmatpush1.msra.mxu0 0.0
        %230 = vmatprep.subr.mxu0 0.0
        %231 = vmatpush1.msra.mxu0 0.0
        %232 = vmatprep.subr.mxu0 0.0
        %233 = vmatpush1.msra.mxu0 0.0
        %234 = vmatprep.subr.mxu0 0.0
        %235 = vmatpush1.msra.mxu0 0.0
        %236 = vmatprep.subr.mxu0 0.0
        %237 = vmatpush1.msra.mxu0 0.0
        %238 = vmatprep.subr.mxu0 0.0
        %239 = vmatpush1.msra.mxu0 0.0
        %240 = vmatprep.subr.mxu0 0.0
        %241 = vmatpush1.msra.mxu0 0.0
        %242 = vmatprep.subr.mxu0 0.0
        %243 = vmatpush1.msra.mxu0 0.0
        %244 = vmatprep.subr.mxu0 0.0
        %245 = vmatpush1.msra.mxu0 0.0
        %246 = vmatprep.subr.mxu0 0.0
        %247 = vmatpush1.msra.mxu0 0.0
        %248 = vmatprep.subr.mxu0 0.0
        %249 = vmatpush1.msra.mxu0 0.0
        %250 = vmatprep.subr.mxu0 0.0
        %251 = vmatpush1.msra.mxu0 0.0
        %252 = vmatprep.subr.mxu0 0.0
        %253 = vmatpush1.msra.mxu0 0.0
        %254 = vmatprep.subr.mxu0 0.0
        %255 = vmatpush1.msra.mxu0 0.0
        %256 = vmatprep.subr.mxu0 %v220
        %257 = vmatpush1.msra.mxu0 %v217
        %258 = vmatprep.subr.mxu0 %v204
        %259 = vmatpush1.msra.mxu0 %v203
        %260 = vmatprep.subr.mxu0 0.0
        %261 = vmatpush2.msra.mxu0 0.0
        %262 = vmatprep.subr.mxu0 0.0
        %263 = vmatpush2.msra.mxu0 0.0
        %264 = vmatprep.subr.mxu0 0.0
        %265 = vmatpush2.msra.mxu0 0.0
        %266 = vmatprep.subr.mxu0 0.0
        %267 = vmatpush2.msra.mxu0 0.0
        %268 = vmatprep.subr.mxu0 0.0
        %269 = vmatpush2.msra.mxu0 0.0
        %270 = vmatprep.subr.mxu0 0.0
        %271 = vmatpush2.msra.mxu0 0.0
        %272 = vmatprep.subr.mxu0 0.0
        %273 = vmatpush2.msra.mxu0 0.0
        %274 = vmatprep.subr.mxu0 0.0
        %275 = vmatpush2.msra.mxu0 0.0
        %276 = vmatprep.subr.mxu0 0.0
        %277 = vmatpush2.msra.mxu0 0.0
        %278 = vmatprep.subr.mxu0 0.0
        %279 = vmatpush2.msra.mxu0 0.0
        %280 = vmatprep.subr.mxu0 0.0
        %281 = vmatpush2.msra.mxu0 0.0
        %282 = vmatprep.subr.mxu0 0.0
        %283 = vmatpush2.msra.mxu0 0.0
        %284 = vmatprep.subr.mxu0 0.0
        %285 = vmatpush2.msra.mxu0 0.0
        %286 = vmatprep.subr.mxu0 0.0
        %287 = vmatpush2.msra.mxu0 0.0
        %288 = vmatprep.subr.mxu0 0.0
        %289 = vmatpush2.msra.mxu0 0.0
        %290 = vmatprep.subr.mxu0 0.0
        %291 = vmatpush2.msra.mxu0 0.0
        %292 = vmatprep.mubr.f32.mxu0 0.0
        %293 = vmatmul.mubr.f32.gmra.mxu0 %v213
        %v294 = vpop.f32.mrf.mxu0
        %v295 = vadd.f32 0.0, %v294
        %v296 = vpop.f32.mrf.mxu0
        %v297 = vadd.f32 0.0, %v296
        %298 = vdwg.mxu0
        %299 = vmatprep.subr.mxu0 0.0
        %300 = vmatpush1.msra.mxu0 0.0
        %301 = vmatprep.subr.mxu0 0.0
        %302 = vmatpush1.msra.mxu0 0.0
        %303 = vmatprep.subr.mxu0 0.0
        %304 = vmatpush1.msra.mxu0 0.0
        %305 = vmatprep.subr.mxu0 0.0
        %306 = vmatpush1.msra.mxu0 0.0
        %307 = vmatprep.subr.mxu0 0.0
        %308 = vmatpush1.msra.mxu0 0.0
        %309 = vmatprep.subr.mxu0 0.0
        %310 = vmatpush1.msra.mxu0 0.0
        %311 = vmatprep.subr.mxu0 0.0
        %312 = vmatpush1.msra.mxu0 0.0
        %313 = vmatprep.subr.mxu0 0.0
        %314 = vmatpush1.msra.mxu0 0.0
        %315 = vmatprep.subr.mxu0 0.0
        %316 = vmatpush1.msra.mxu0 0.0
        %317 = vmatprep.subr.mxu0 0.0
        %318 = vmatpush1.msra.mxu0 0.0
        %319 = vmatprep.subr.mxu0 0.0
        %320 = vmatpush1.msra.mxu0 0.0
        %321 = vmatprep.subr.mxu0 0.0
        %322 = vmatpush1.msra.mxu0 0.0
        %323 = vmatprep.subr.mxu0 0.0
        %324 = vmatpush1.msra.mxu0 0.0
        %325 = vmatprep.subr.mxu0 0.0
        %326 = vmatpush1.msra.mxu0 0.0
        %327 = vmatprep.subr.mxu0 %v226
        %328 = vmatpush1.msra.mxu0 %v223
        %329 = vmatprep.subr.mxu0 %v206
        %330 = vmatpush1.msra.mxu0 %v205
        %331 = vmatprep.subr.mxu0 0.0
        %332 = vmatpush2.msra.mxu0 0.0
        %333 = vmatprep.subr.mxu0 0.0
        %334 = vmatpush2.msra.mxu0 0.0
        %335 = vmatprep.subr.mxu0 0.0
        %336 = vmatpush2.msra.mxu0 0.0
        %337 = vmatprep.subr.mxu0 0.0
        %338 = vmatpush2.msra.mxu0 0.0
        %339 = vmatprep.subr.mxu0 0.0
        %340 = vmatpush2.msra.mxu0 0.0
        %341 = vmatprep.subr.mxu0 0.0
        %342 = vmatpush2.msra.mxu0 0.0
        %343 = vmatprep.subr.mxu0 0.0
        %344 = vmatpush2.msra.mxu0 0.0
        %345 = vmatprep.subr.mxu0 0.0
        %346 = vmatpush2.msra.mxu0 0.0
        %347 = vmatprep.subr.mxu0 0.0
        %348 = vmatpush2.msra.mxu0 0.0
        %349 = vmatprep.subr.mxu0 0.0
        %350 = vmatpush2.msra.mxu0 0.0
        %351 = vmatprep.subr.mxu0 0.0
        %352 = vmatpush2.msra.mxu0 0.0
        %353 = vmatprep.subr.mxu0 0.0
        %354 = vmatpush2.msra.mxu0 0.0
        %355 = vmatprep.subr.mxu0 0.0
        %356 = vmatpush2.msra.mxu0 0.0
        %357 = vmatprep.subr.mxu0 0.0
        %358 = vmatpush2.msra.mxu0 0.0
        %359 = vmatprep.subr.mxu0 0.0
        %360 = vmatpush2.msra.mxu0 0.0
        %361 = vmatprep.subr.mxu0 0.0
        %362 = vmatpush2.msra.mxu0 0.0
        %363 = vmatprep.mubr.f32.mxu0 0.0
        %364 = vmatmul.mubr.f32.gmra.mxu0 %v213
        %v365 = vpop.f32.mrf.mxu0
        %v366 = vadd.f32 0.0, %v365
        %v367 = vpop.f32.mrf.mxu0
        %v368 = vadd.f32 0.0, %v367
        %369 = vdwg.mxu0
        %v374 = vcombine.low %v295, %v297
        %v375 = vcombine.low %v366, %v368
        %v377 = vunpack.c.l.s4 1983009808
        %v378 = vunpack.c.0.s8 %v377
        %v379 = vlaneseq
        %v380 = vshrl.u32 %v379, 7
        %v381 = vsub.s32 %v378, %v380
        %v382 = vrot.slane %v374, %v381
        %v384 = vunpack.c.l.s4 1983009808
        %v385 = vunpack.c.0.s8 %v384
        %v386 = vlaneseq
        %v387 = vshrl.u32 %v386, 7
        %v388 = vsub.s32 %v385, %v387
        %v389 = vrot.slane %v375, %v388
        %v390 = vcombine.low %v382, %v389
        %392 = vst [vmem:[%s195] sm:$0xff] %v390
        %s393 = sand.u32 %s94, 1
        %s394 = scalar_lea.sflag [#allocation4], %s393
        %s395 = sand.u32 %s94, 1
        %s396 = smul.addr %s395, 8
        %s397 = scalar_lea.vmem [#allocation7], %s396
        // Predicated region
        $region37: #{tpu_custom_call.1} parent=27 // pred_check
          %p398 = pneg %p104
        $region38: #{tpu_custom_call.1} parent=27 // pred_check_branch
          %400 = sbr.rel (%p398) target = $region40
        $region39: #{tpu_custom_call.1} parent=27 // pred_region
          %s401 = smul.u32 4, %s25
          %s403 = ssub.s32 128, 128
          %404 = vsyncadd %s394, %s403
          %s405 = smul.addr %s24, 8
          %s406 = sadd.s32 %s401, %s405
          %s407 = smul.addr %s406, 32
          %s408 = scalar_lea.hbm %s2, %s407
          %s410 = sshll.u32 %s397, 4
          %s411 = int_to_ptr.vmem [resolvable:$true] %s410
          %413 = dma.vmem_to_hbm [thread:$0]  %s411, 128, %s408, %s394
        $region40: #{tpu_custom_call.1} parent=27 // pred_fallthru
          _
      $region28: #{tpu_custom_call.1} parent=5 // pred_fallthru
        _
      %p414 = scmp.le.s32.totalorder 2, %s15
      // Predicated region
      $region41: #{tpu_custom_call.1} parent=5 // pred_check
        %p415 = pneg %p414
      $region42: #{tpu_custom_call.1} parent=5 // pred_check_branch
        %417 = sbr.rel (%p415) target = $region44
      $region43: #{tpu_custom_call.1} parent=5 // pred_region
        %s418 = ssub.s32 %s15, 2
        // Predicated region
        $region45: #{tpu_custom_call.1} parent=43 // pred_check
          %p419 = pneg %p110
        $region46: #{tpu_custom_call.1} parent=43 // pred_check_branch
          %421 = sbr.rel (%p419) target = $region48
        $region47: #{tpu_custom_call.1} parent=43 // pred_region
          %s422 = sand.u32 %s95, 1
          %s423 = scalar_lea.sflag [#allocation4], %s422
          %s424 = sand.u32 %s95, 1
          %s425 = smul.addr %s424, 8
          %s426 = scalar_lea.vmem [#allocation7], %s425
          %427 = dma.done %s423, 128
        $region48: #{tpu_custom_call.1} parent=43 // pred_fallthru
          _
      $region44: #{tpu_custom_call.1} parent=5 // pred_fallthru
        _
    $region6: #{tpu_custom_call.1} parent=1 // loop_footer
      %s19 = sadd.s32 1, %s15
    $region7: #{tpu_custom_call.1} parent=1 // loop_footer_branch
      %14 = sbr.rel target = $region3
    $region8: #{tpu_custom_call.1} parent=1 // loop_exit
      _
    %428 = vsyncpa [#allocation3], 1
    %s429 = scalar_lea.sflag [#allocation3], 1
    %430 = vsyncpa %s429, 1
    %431 = vsyncpa [#allocation6], 1
    %s432 = scalar_lea.sflag [#allocation6], 1
    %433 = vsyncpa %s432, 1
    %434 = vsyncpa [#allocation4], 1
    %s435 = scalar_lea.sflag [#allocation4], 1
    %436 = vsyncpa %s435, 1

</llo_original>
